<compile_context>
chip_gen: v5e
topology: v5e:2x2
jax: 0.10.0
libtpu: 0.0.40
codegen_flags: <defaults>
</compile_context>

<pallas_src>
import jax
import jax.numpy as jnp
from jax import lax
from jax.experimental import pallas as pl
from jax.experimental.pallas import tpu as pltpu

TEMPERATURE = 0.07   # matches SupervisedContrastiveLoss(temperature=0.07)
_LANES = 128
_SUBLANES = 8
_MIB = 1024 * 1024


def _round_up(x, m):
    return (x + m - 1) // m * m


def _vmem_capacity_bytes():
    """Physical VMEM of the current TPU generation (conservative fallback)."""
    try:
        info = pltpu.get_tpu_info()
        cap = getattr(info, "vmem_capacity_bytes", None)
        if cap:
            return int(cap)
    except Exception:
        pass
    return 64 * _MIB     # conservative (v7x-sized) fallback


def _const_block_spec(shape):
    """Constant-index resident block; single-buffered when supported."""
    idx_map = lambda i: (0,) * len(shape)
    try:
        return pl.BlockSpec(shape, idx_map, pipeline_mode=pl.Buffered(1))
    except TypeError:                       # older jax without pipeline_mode kwarg
        return pl.BlockSpec(shape, idx_map)


def _make_kernel(n_real, tq, bp, temperature):
    """Build the per-tile kernel (closes over static sizes)."""
    inv_t = float(1.0 / temperature)
    padded_cols = (bp != n_real)

    def kernel(q_ref, kT_ref, ql_ref, kl_ref, valid_ref, out_ref):
        # q_ref:    (tq, D)  pre-normalized queries, already scaled by 1/T (mm dtype)
        # kT_ref:   (D, bp)  pre-normalized keys, transposed (mm dtype, resident)
        # ql_ref:   (tq, 1)  int32 query labels
        # kl_ref:   (1, bp)  int32 key labels (resident)
        # valid_ref:(tq, 1)  f32, 1.0 iff anchor has >= 1 positive (0 on padded rows)
        # out_ref:  (1, 8, 128) f32 partials: sublane 0 = sum(log_prob), 1 = n_valid

        # ---- similarity on the MXU; operands already normalized / scaled ---------
        sim = lax.dot_general(q_ref[...], kT_ref[...],
                              (((1,), (0,)), ((), ())),
                              preferred_element_type=jnp.float32)        # (tq, bp)

        # Row max is analytically 1/T (unit-norm rows, query pre-scaled by 1/T) and
        # the num/den ratio is invariant to the stabilizer -> constant stabilizer.
        exp_logits = jnp.exp(sim - inv_t)                                 # <= ~1

        # ---- masks from small iotas; padded-column mask folded into not_self -----
        col_idx = lax.broadcasted_iota(jnp.int32, (1, bp), 1)             # (1, bp)
        row_idx = (pl.program_id(0) * tq
                   + lax.broadcasted_iota(jnp.int32, (tq, 1), 0))         # (tq, 1)

        not_self = row_idx != col_idx
        if padded_cols:
            not_self = jnp.logical_and(not_self, col_idx < n_real)
        same = ql_ref[...] == kl_ref[...]                                  # (tq, bp)

        # exp with self / padded columns zeroed exactly; positives reuse it, so the
        # padded-column mask never needs to be applied a second time.
        exp_ns = jnp.where(not_self, exp_logits, 0.0)                      # (tq, bp)
        den = jnp.sum(exp_ns, axis=1, keepdims=True)                       # (tq, 1)
        num = jnp.sum(jnp.where(same, exp_ns, 0.0), axis=1, keepdims=True)

        valid = valid_ref[...] > 0.0                                       # (tq, 1)
        safe_num = jnp.where(valid, num, den)          # keeps log() well defined
        log_prob = jnp.where(valid, jnp.log(safe_num / den), 0.0)

        lp_sum = jnp.sum(log_prob)                     # scalar partials for this tile
        nv_sum = jnp.sum(valid_ref[...])

        # Single lane-dense (8, 128) slab, one unmasked store per tile.
        sub_idx = lax.broadcasted_iota(jnp.int32, (1, _SUBLANES, _LANES), 1)
        out_ref[...] = jnp.where(sub_idx == 0, lp_sum,
                                 jnp.where(sub_idx == 1, nv_sum, 0.0))

    return kernel


def supervised_contrastive_loss(features, labels, *, temperature=TEMPERATURE,
                                block_q=None):
    """features: [B, D] float (f32/bf16/f16), labels: [B] int -> scalar f32 loss."""
    assert features.ndim == 2 and labels.ndim == 1 and labels.shape[0] == features.shape[0]
    b, d = features.shape
    inv_t = float(1.0 / temperature)

    # Matmul operand dtype: keep low precision when the input already is, f32 otherwise.
    low_prec = features.dtype.name in ("bfloat16", "float16")
    mm_dtype = features.dtype if low_prec else jnp.float32
    mm_b = jnp.dtype(mm_dtype).itemsize
    gran = 16 if low_prec else _SUBLANES      # sublane granule for the query tile

    # ---- generation-aware tile / VMEM budget ------------------------------------
    vmem_cap = _vmem_capacity_bytes()
    ws_threshold = (24 if vmem_cap <= 80 * _MIB else 40) * _MIB
    if block_q is None:
        # v6e (128 MiB VMEM) feeds its 256-wide MXU better with 256-row LHS tiles;
        # keep 128 on 64 MiB-class chips (v7x) to stay well inside VMEM.
        block_q = 256 if vmem_cap >= 96 * _MIB else 128

    bp = _round_up(b, _LANES)                 # lane-dense key columns
    tq = max(gran, _round_up(min(block_q, _round_up(b, gran)), gran))

    def _working_set(tq_):
        return (d * bp * mm_b                 # resident key block (single-buffered)
                + bp * 4                      # key labels (single-buffered)
                + 2 * tq_ * (d * mm_b + 8)    # double-buffered query tile + labels/valid
                + 6 * tq_ * bp * 4)           # (tq, bp) f32 temporaries (sim/exp/masks)

    while tq > gran and _working_set(tq) > ws_threshold:
        tq = max(gran, _round_up(tq // 2, gran))

    bq = _round_up(b, tq)                     # query rows padded only to tq
    n_tiles = bq // tq

    vmem_cap_budget = max(16 * _MIB, vmem_cap - 8 * _MIB)     # ~56 MiB on v7x
    vmem_limit = int(min(vmem_cap_budget,
                         max(32 * _MIB, 2 * _working_set(tq))))

    # ---- hoisted preprocessing: normalize once, cast, transpose, fold 1/T --------
    f32 = features.astype(jnp.float32)
    ss = jnp.sum(f32 * f32, axis=1, keepdims=True)
    fn = f32 * lax.rsqrt(jnp.maximum(ss, 1e-24))     # == x / max(||x||, 1e-12)

    q = (fn * inv_t).astype(mm_dtype)                # queries carry the 1/T scale
    kT = fn.astype(mm_dtype).T                       # (D, B) -> MXU RHS layout

    labs = labels.astype(jnp.int32)
    counts = jnp.sum(labs[:, None] == labs[None, :], axis=1)   # O(B^2) wrapper, cheap
    valid_f = (counts > 1).astype(jnp.float32)

    if bq != b:
        q = jnp.pad(q, ((0, bq - b), (0, 0)))
        valid_f = jnp.pad(valid_f, (0, bq - b))
        ql = jnp.pad(labs, (0, bq - b))
    else:
        ql = labs
    if bp != b:
        kT = jnp.pad(kT, ((0, 0), (0, bp - b)))
        kl = jnp.pad(labs, (0, bp - b))
    else:
        kl = labs

    ql = ql.reshape(bq, 1)
    kl = kl.reshape(1, bp)
    valid_f = valid_f.reshape(bq, 1)

    kernel = _make_kernel(b, tq, bp, temperature)

    part = pl.pallas_call(
        kernel,
        grid=(n_tiles,),
        in_specs=[
            pl.BlockSpec((tq, d), lambda i: (i, 0)),    # query feature rows (tiled)
            _const_block_spec((d, bp)),                 # resident transposed key block
            pl.BlockSpec((tq, 1), lambda i: (i, 0)),    # query labels
            _const_block_spec((1, bp)),                 # resident key labels
            pl.BlockSpec((tq, 1), lambda i: (i, 0)),    # valid-anchor flags
        ],
        out_specs=pl.BlockSpec((1, _SUBLANES, _LANES), lambda i: (i, 0, 0)),
        out_shape=jax.ShapeDtypeStruct((n_tiles, _SUBLANES, _LANES), jnp.float32),
        compiler_params=pltpu.CompilerParams(
            dimension_semantics=("parallel",),
            vmem_limit_bytes=vmem_limit),
    )(q, kT, ql, kl, valid_f)

    total_lp = jnp.sum(part[:, 0, 0])
    n_valid = jnp.sum(part[:, 1, 0])
    return jnp.where(n_valid > 0.0, -total_lp / jnp.maximum(n_valid, 1.0),
                     jnp.float32(0.0))


def _reference_loss(features, labels, temperature=TEMPERATURE):
    """Pure-JAX reference mirroring the PyTorch forward."""
    f = features.astype(jnp.float32)
    b = f.shape[0]
    fn = f / jnp.maximum(jnp.linalg.norm(f, axis=1, keepdims=True), 1e-12)
    sim = (fn @ fn.T) / temperature
    same = labels[:, None] == labels[None, :]
    eye = jnp.eye(b, dtype=bool)
    mask_pos = same & ~eye
    exp_logits = jnp.exp(sim - jnp.max(sim, axis=1, keepdims=True))
    num = jnp.sum(exp_logits * mask_pos, axis=1)
    den = jnp.sum(exp_logits * ~eye, axis=1)
    valid = jnp.sum(mask_pos, axis=1) > 0
    log_prob = jnp.where(valid, jnp.log(num / den), 0.0)
    n_valid = jnp.sum(valid.astype(jnp.float32))
    return jnp.where(n_valid > 0, -jnp.sum(log_prob) / jnp.maximum(n_valid, 1.0), 0.0)


if __name__ == "__main__":
    key = jax.random.PRNGKey(0)
    kf, kl_ = jax.random.split(key)
    b, d = 32, 64
    feats = jax.random.normal(kf, (b, d), dtype=jnp.float32)
    labels = jax.random.randint(kl_, (b,), 0, 4, dtype=jnp.int32)

    # 1) single-tile f32 path (tolerance covers f32 matmul precision-path differences
    #    between the Pallas/Mosaic dot and the XLA reference matmul).
    loss = supervised_contrastive_loss(feats, labels)
    jax.block_until_ready(loss)
    ref = _reference_loss(feats, labels)
    assert jnp.allclose(loss, ref, atol=2e-2, rtol=2e-2), (loss, ref)

    # 2) multi-tile grid with query-row and key-column padding (B=20, tq=8 -> 3 tiles,
    #    keys padded to 128 lanes).
    loss2 = supervised_contrastive_loss(feats[:20], labels[:20], block_q=8)
    jax.block_until_ready(loss2)
    ref2 = _reference_loss(feats[:20], labels[:20])
    assert jnp.allclose(loss2, ref2, atol=2e-2, rtol=2e-2), (loss2, ref2)

    # 3) native bf16 features -> bf16 MXU operands (looser tolerance vs f32 reference;
    #    1/T is folded into the bf16 query operand).
    loss3 = supervised_contrastive_loss(feats.astype(jnp.bfloat16), labels, block_q=16)
    jax.block_until_ready(loss3)
    assert bool(jnp.isfinite(loss3))
    assert jnp.allclose(loss3, ref, atol=0.05, rtol=0.1), (loss3, ref)

    print("KERNEL_OK")
</pallas_src>

<mosaic_0001>
module attributes {stable_mosaic.version = 11 : i64} {
  func.func @kernel(%arg0: i32, %arg1: memref<32x64xf32, #tpu.memory_space<vmem>>, %arg2: memref<64x128xf32, #tpu.memory_space<vmem>>, %arg3: memref<32x1xi32, #tpu.memory_space<vmem>>, %arg4: memref<1x128xi32, #tpu.memory_space<vmem>>, %arg5: memref<32x1xf32, #tpu.memory_space<vmem>>, %arg6: memref<1x8x128xf32, #tpu.memory_space<vmem>>) attributes {dimension_semantics = [#tpu.dimension_semantics<parallel>], iteration_bounds = array<i64: 1>, scalar_prefetch = 0 : i64, scratch_operands = 0 : i64, tpu.core_type = #tpu.core_type<tc>, window_params = [{transform_indices = @transform_0, window_bounds = array<i64: 32, 64>}, {pipeline_mode = #tpu.pipeline_mode<synchronous>, transform_indices = @transform_1, window_bounds = array<i64: 64, 128>}, {transform_indices = @transform_2, window_bounds = array<i64: 32, 1>}, {pipeline_mode = #tpu.pipeline_mode<synchronous>, transform_indices = @transform_3, window_bounds = array<i64: 1, 128>}, {transform_indices = @transform_4, window_bounds = array<i64: 32, 1>}, {transform_indices = @transform_5, window_bounds = array<i64: 1, 8, 128>}]} {
    %c0 = arith.constant 0 : index
    %c0_0 = arith.constant 0 : index
    %0 = vector.load %arg1[%c0, %c0_0] : memref<32x64xf32, #tpu.memory_space<vmem>>, vector<32x64xf32>
    %c0_1 = arith.constant 0 : index
    %c0_2 = arith.constant 0 : index
    %1 = vector.load %arg2[%c0_1, %c0_2] : memref<64x128xf32, #tpu.memory_space<vmem>>, vector<64x128xf32>
    %cst = arith.constant dense<0.000000e+00> : vector<32x128xf32>
    %2 = tpu.matmul %0, %1, %cst {dimension_numbers = #tpu.dot_dimension_numbers<[1], [0], [0], [1], [0, 0, 1, 1], [], []>} : vector<32x64xf32>, vector<64x128xf32>, vector<32x128xf32> -> vector<32x128xf32>
    %cst_3 = arith.constant 14.2857141 : f32
    %3 = vector.broadcast %cst_3 : f32 to vector<32x128xf32>
    %4 = arith.subf %2, %3 : vector<32x128xf32>
    %5 = math.exp %4 : vector<32x128xf32>
    %6 = tpu.iota {dimensions = array<i32: 1>} : vector<1x128xi32>
    %c32_i32 = arith.constant 32 : i32
    %7 = arith.muli %arg0, %c32_i32 : i32
    %8 = tpu.iota {dimensions = array<i32: 0>} : vector<32x1xi32>
    %9 = vector.broadcast %7 : i32 to vector<32x1xi32>
    %10 = arith.addi %9, %8 : vector<32x1xi32>
    %11 = vector.broadcast %10 : vector<32x1xi32> to vector<32x128xi32>
    %12 = vector.broadcast %6 : vector<1x128xi32> to vector<32x128xi32>
    %13 = arith.cmpi ne, %11, %12 : vector<32x128xi32>
    %c32_i32_4 = arith.constant 32 : i32
    %14 = vector.broadcast %c32_i32_4 : i32 to vector<1x128xi32>
    %15 = arith.cmpi slt, %6, %14 : vector<1x128xi32>
    %16 = vector.broadcast %15 : vector<1x128xi1> to vector<32x128xi1>
    %17 = arith.andi %13, %16 : vector<32x128xi1>
    %c0_5 = arith.constant 0 : index
    %c0_6 = arith.constant 0 : index
    %18 = vector.load %arg3[%c0_5, %c0_6] : memref<32x1xi32, #tpu.memory_space<vmem>>, vector<32x1xi32>
    %c0_7 = arith.constant 0 : index
    %c0_8 = arith.constant 0 : index
    %19 = vector.load %arg4[%c0_7, %c0_8] : memref<1x128xi32, #tpu.memory_space<vmem>>, vector<1x128xi32>
    %20 = vector.broadcast %18 : vector<32x1xi32> to vector<32x128xi32>
    %21 = vector.broadcast %19 : vector<1x128xi32> to vector<32x128xi32>
    %22 = arith.cmpi eq, %20, %21 : vector<32x128xi32>
    %cst_9 = arith.constant 0.000000e+00 : f32
    %23 = vector.broadcast %cst_9 : f32 to vector<32x128xf32>
    %24 = arith.select %17, %5, %23 : vector<32x128xi1>, vector<32x128xf32>
    %cst_10 = arith.constant dense<0.000000e+00> : vector<32xf32>
    %25 = vector.multi_reduction <add>, %24, %cst_10 [1] : vector<32x128xf32> to vector<32xf32>
    %26 = vector.shape_cast %25 : vector<32xf32> to vector<32x1xf32>
    %cst_11 = arith.constant 0.000000e+00 : f32
    %27 = vector.broadcast %cst_11 : f32 to vector<32x128xf32>
    %28 = arith.select %22, %24, %27 : vector<32x128xi1>, vector<32x128xf32>
    %cst_12 = arith.constant dense<0.000000e+00> : vector<32xf32>
    %29 = vector.multi_reduction <add>, %28, %cst_12 [1] : vector<32x128xf32> to vector<32xf32>
    %30 = vector.shape_cast %29 : vector<32xf32> to vector<32x1xf32>
    %c0_13 = arith.constant 0 : index
    %c0_14 = arith.constant 0 : index
    %31 = vector.load %arg5[%c0_13, %c0_14] : memref<32x1xf32, #tpu.memory_space<vmem>>, vector<32x1xf32>
    %cst_15 = arith.constant 0.000000e+00 : f32
    %32 = vector.broadcast %cst_15 : f32 to vector<32x1xf32>
    %33 = arith.cmpf ogt, %31, %32 : vector<32x1xf32>
    %34 = arith.select %33, %30, %26 : vector<32x1xi1>, vector<32x1xf32>
    %35 = arith.divf %34, %26 : vector<32x1xf32>
    %36 = math.log %35 : vector<32x1xf32>
    %cst_16 = arith.constant 0.000000e+00 : f32
    %37 = vector.broadcast %cst_16 : f32 to vector<32x1xf32>
    %38 = arith.select %33, %36, %37 : vector<32x1xi1>, vector<32x1xf32>
    %39 = vector.shape_cast %38 : vector<32x1xf32> to vector<1x32x1xf32>
    %cst_17 = arith.constant dense<0.000000e+00> : vector<1xf32>
    %40 = vector.multi_reduction <add>, %39, %cst_17 [1, 2] : vector<1x32x1xf32> to vector<1xf32>
    %41 = vector.shape_cast %40 : vector<1xf32> to vector<1x1x1xf32>
    %42 = vector.extract %41[0, 0, 0] : f32 from vector<1x1x1xf32>
    %c0_18 = arith.constant 0 : index
    %c0_19 = arith.constant 0 : index
    %43 = vector.load %arg5[%c0_18, %c0_19] : memref<32x1xf32, #tpu.memory_space<vmem>>, vector<32x1xf32>
    %44 = vector.shape_cast %43 : vector<32x1xf32> to vector<1x32x1xf32>
    %cst_20 = arith.constant dense<0.000000e+00> : vector<1xf32>
    %45 = vector.multi_reduction <add>, %44, %cst_20 [1, 2] : vector<1x32x1xf32> to vector<1xf32>
    %46 = vector.shape_cast %45 : vector<1xf32> to vector<1x1x1xf32>
    %47 = vector.extract %46[0, 0, 0] : f32 from vector<1x1x1xf32>
    %48 = tpu.iota {dimensions = array<i32: 1>} : vector<1x8x128xi32>
    %c0_i32 = arith.constant 0 : i32
    %49 = vector.broadcast %c0_i32 : i32 to vector<1x8x128xi32>
    %50 = arith.cmpi eq, %48, %49 : vector<1x8x128xi32>
    %c1_i32 = arith.constant 1 : i32
    %51 = vector.broadcast %c1_i32 : i32 to vector<1x8x128xi32>
    %52 = arith.cmpi eq, %48, %51 : vector<1x8x128xi32>
    %cst_21 = arith.constant 0.000000e+00 : f32
    %53 = vector.broadcast %47 : f32 to vector<1x8x128xf32>
    %54 = vector.broadcast %cst_21 : f32 to vector<1x8x128xf32>
    %55 = arith.select %52, %53, %54 : vector<1x8x128xi1>, vector<1x8x128xf32>
    %56 = vector.broadcast %42 : f32 to vector<1x8x128xf32>
    %57 = arith.select %50, %56, %55 : vector<1x8x128xi1>, vector<1x8x128xf32>
    %c0_22 = arith.constant 0 : index
    %c0_23 = arith.constant 0 : index
    %c0_24 = arith.constant 0 : index
    %58 = vector.load %arg6[%c0_22, %c0_23, %c0_24] : memref<1x8x128xf32, #tpu.memory_space<vmem>>, vector<1x8x128xf32>
    tpu.vector_store %arg6[%c0_22, %c0_23, %c0_24], %57 {strides = array<i32>} : memref<1x8x128xf32, #tpu.memory_space<vmem>>, vector<1x8x128xf32>,
    return
  }
  func.func @transform_0(%arg0: i32) -> (i32, i32) {
    %c0_i32 = arith.constant 0 : i32
    %c0_i32_0 = arith.constant 0 : i32
    return %arg0, %c0_i32 : i32, i32
  }
  func.func @transform_1(%arg0: i32) -> (i32, i32) {
    %c0_i32 = arith.constant 0 : i32
    %c0_i32_0 = arith.constant 0 : i32
    %c0_i32_1 = arith.constant 0 : i32
    return %c0_i32, %c0_i32_0 : i32, i32
  }
  func.func @transform_2(%arg0: i32) -> (i32, i32) {
    %c0_i32 = arith.constant 0 : i32
    %c0_i32_0 = arith.constant 0 : i32
    return %arg0, %c0_i32 : i32, i32
  }
  func.func @transform_3(%arg0: i32) -> (i32, i32) {
    %c0_i32 = arith.constant 0 : i32
    %c0_i32_0 = arith.constant 0 : i32
    %c0_i32_1 = arith.constant 0 : i32
    return %c0_i32, %c0_i32_0 : i32, i32
  }
  func.func @transform_4(%arg0: i32) -> (i32, i32) {
    %c0_i32 = arith.constant 0 : i32
    %c0_i32_0 = arith.constant 0 : i32
    return %arg0, %c0_i32 : i32, i32
  }
  func.func @transform_5(%arg0: i32) -> (i32, i32, i32) {
    %c0_i32 = arith.constant 0 : i32
    %c0_i32_0 = arith.constant 0 : i32
    %c0_i32_1 = arith.constant 0 : i32
    return %arg0, %c0_i32, %c0_i32_0 : i32, i32, i32
  }
}

</mosaic_0001>

<llo_original>
// kernel: tpu_custom_call.1
$region0: #{tpu_custom_call.1}
  #allocation0 [shape = 'u32[]', space=smem, size = 0x4, offset = 0x4, fixed_abs, tag = 'smem constant byte address 0x4 - core index']
  #allocation1 [shape = 'u32[72,128]{1,0:T(1,128)}', space=vmem, size = 0x9000, scoped, tag = 'internal scratch']
  %s0 = inlined_call_operand.hbm [shape: f32[32,64], index: 0, kind: input, shape index: {}]
  %s1 = inlined_call_operand.vmem [shape: f32[64,128], index: 1, kind: input, shape index: {}]
  %s2 = inlined_call_operand.vmem [shape: s32[32,1], index: 2, kind: input, shape index: {}]
  %s3 = inlined_call_operand.vmem [shape: s32[1,128], index: 3, kind: input, shape index: {}]
  %s4 = inlined_call_operand.vmem [shape: f32[32,1], index: 4, kind: input, shape index: {}]
  %s5 = inlined_call_operand.hbm [shape: f32[1,8,128], index: 5, kind: output, shape index: {}]
  %s6 = sld [smem:[#allocation0]]
  $region34: #{tpu_custom_call.1} parent=0
    _
  %s8 = ssub.s32 1, %s6
  %s9 = scalar_select 0, %s8, %s6
  $region1: #{tpu_custom_call.1} parent=0
    #allocation2 [shape = 'u8[16384]{0}', space=vmem, size = 0x4000, scoped, tag = 'input window, operand 0, single buffered']
    #allocation3 [shape = 's32[1]{0}', space=sflag, size = 0x4, scoped, tag = 'scoped memory for tpu_custom_call.1']
    #allocation4 [shape = 's32[1]{0}', space=sflag, size = 0x4, scoped, tag = 'scoped memory for tpu_custom_call.1']
    #allocation5 [shape = 'u8[4096]{0}', space=vmem, size = 0x1000, scoped, tag = 'output window, operand 0, single buffered']
    %10 = vsyncpa [#allocation3], 0
    %11 = vsyncpa [#allocation4], 0
    // Predicated region
    $region2: #{tpu_custom_call.1} parent=1 // pred_check
      _
    $region3: #{tpu_custom_call.1} parent=1 // pred_check_branch
      %13 = sbr.rel (0) target = $region5
    $region4: #{tpu_custom_call.1} parent=1 // pred_region
      %15 = vsyncadd [#allocation3], 0
      %s16 = sshll.u32 %s0, 4
      %s17 = int_to_ptr.hbm [resolvable:$true] %s16
      %s18 = sshll.u32 [#allocation2], 4
      %s19 = int_to_ptr.vmem [resolvable:$true] %s18
      %24 = dma.hbm_to_vmem [thread:$0]  %s17, 512, %s19, [#allocation3], 128, 128, 8
    $region5: #{tpu_custom_call.1} parent=1 // pred_fallthru
      _
    // Predicated region
    $region6: #{tpu_custom_call.1} parent=1 // pred_check
      _
    $region7: #{tpu_custom_call.1} parent=1 // pred_check_branch
      %26 = sbr.rel (0) target = $region9
    $region8: #{tpu_custom_call.1} parent=1 // pred_region
      _
    $region9: #{tpu_custom_call.1} parent=1 // pred_fallthru
      _
    // Predicated region
    $region10: #{tpu_custom_call.1} parent=1 // pred_check
      _
    $region11: #{tpu_custom_call.1} parent=1 // pred_check_branch
      %28 = sbr.rel (0) target = $region13
    $region12: #{tpu_custom_call.1} parent=1 // pred_region
      _
    $region13: #{tpu_custom_call.1} parent=1 // pred_fallthru
      _
    // Predicated region
    $region14: #{tpu_custom_call.1} parent=1 // pred_check
      _
    $region15: #{tpu_custom_call.1} parent=1 // pred_check_branch
      %30 = sbr.rel (0) target = $region17
    $region16: #{tpu_custom_call.1} parent=1 // pred_region
      _
    $region17: #{tpu_custom_call.1} parent=1 // pred_fallthru
      _
    // Predicated region
    $region18: #{tpu_custom_call.1} parent=1 // pred_check
      _
    $region19: #{tpu_custom_call.1} parent=1 // pred_check_branch
      %32 = sbr.rel (0) target = $region21
    $region20: #{tpu_custom_call.1} parent=1 // pred_region
      _
    $region21: #{tpu_custom_call.1} parent=1 // pred_fallthru
      _
    // Predicated region
    $region22: #{tpu_custom_call.1} parent=1 // pred_check
      _
    $region23: #{tpu_custom_call.1} parent=1 // pred_check_branch
      %34 = sbr.rel (0) target = $region25
    $region24: #{tpu_custom_call.1} parent=1 // pred_region
      %36 = dma.done [#allocation3], 512
    $region25: #{tpu_custom_call.1} parent=1 // pred_fallthru
      _
    %v37 = vld [vmem:[#allocation2] sm:$0xff]
    %v38 = vld [vmem:[#allocation2 + $0x8] sm:$0xff]
    %v39 = vld [vmem:[#allocation2 + $0x10] sm:$0xff]
    %v40 = vld [vmem:[#allocation2 + $0x18] sm:$0xff]
    %v41 = vld [vmem:[%s1] sm:$0xff]
    %v42 = vld [vmem:[%s1 + $0x8] sm:$0xff]
    %v43 = vld [vmem:[%s1 + $0x10] sm:$0xff]
    %v44 = vld [vmem:[%s1 + $0x18] sm:$0xff]
    %v45 = vld [vmem:[%s1 + $0x20] sm:$0xff]
    %v46 = vld [vmem:[%s1 + $0x28] sm:$0xff]
    %v47 = vld [vmem:[%s1 + $0x30] sm:$0xff]
    %v48 = vld [vmem:[%s1 + $0x38] sm:$0xff]
    %vm49 = vcmask 523264
    %v51 = vsel %vm49, %v37, 0
    %v54 = vsel %vm49, %v38, 0
    %v57 = vsel %vm49, %v39, 0
    %v60 = vsel %vm49, %v40, 0
    %62 = vmatpush.msra.mxu0 0.0
    %63 = vmatpush.msra.mxu0 0.0
    %64 = vmatpush.msra.mxu0 0.0
    %65 = vmatpush.msra.mxu0 0.0
    %66 = vmatpush.msra.mxu0 0.0
    %67 = vmatpush.msra.mxu0 0.0
    %68 = vmatpush.msra.mxu0 0.0
    %69 = vmatpush.msra.mxu0 0.0
    %70 = vmatpush.msra.mxu0 %v48
    %71 = vmatpush.msra.mxu0 %v47
    %72 = vmatpush.msra.mxu0 %v46
    %73 = vmatpush.msra.mxu0 %v45
    %74 = vmatpush.msra.mxu0 %v44
    %75 = vmatpush.msra.mxu0 %v43
    %76 = vmatpush.msra.mxu0 %v42
    %77 = vmatpush.msra.mxu0 %v41
    %78 = vmatmul.f32.gmra.mxu0 %v51
    %v79 = vpop.f32.mrf.mxu0
    %v80 = vadd.f32 0.0, %v79
    %81 = vmatmul.f32.gmra.mxu0 %v54
    %v82 = vpop.f32.mrf.mxu0
    %v83 = vadd.f32 0.0, %v82
    %84 = vmatmul.f32.gmra.mxu0 %v57
    %v85 = vpop.f32.mrf.mxu0
    %v86 = vadd.f32 0.0, %v85
    %87 = vmatmul.f32.gmra.mxu0 %v60
    %v88 = vpop.f32.mrf.mxu0
    %v89 = vadd.f32 0.0, %v88
    %90 = vdwg.mxu0
    %v91 = vsub.f32 %v80, 14.285714
    %v92 = vsub.f32 %v83, 14.285714
    %v93 = vsub.f32 %v86, 14.285714
    %v94 = vsub.f32 %v89, 14.285714
    %v95 = vmul.f32 %v91, 1.442695
    %v96 = vpow.pop %v95
    %v97 = vmul.f32 %v92, 1.442695
    %v98 = vpow.pop %v97
    %v99 = vmul.f32 %v93, 1.442695
    %v100 = vpow.pop %v99
    %v101 = vmul.f32 %v94, 1.442695
    %v102 = vpow.pop %v101
    %v103 = vlaneseq
    %v104 = vand.u32 %v103, 127
    %s105 = smul.u32 0, 32
    %v106 = vlaneseq
    %v107 = vshrl.u32 %v106, 7
    %v108 = vadd.s32 %v107, 8
    %v109 = vadd.s32 %v107, 16
    %v110 = vadd.s32 %v107, 24
    %v111 = vstv %s105
    %v112 = vadd.s32 %v111, %v107
    %v113 = vadd.s32 %v111, %v108
    %v114 = vadd.s32 %v111, %v109
    %v115 = vadd.s32 %v111, %v110
    %vm116 = vcmp.ne.s32.totalorder %v112, %v104
    %vm117 = vcmp.ne.s32.totalorder %v113, %v104
    %vm118 = vcmp.ne.s32.totalorder %v114, %v104
    %vm119 = vcmp.ne.s32.totalorder %v115, %v104
    %vm120 = vcmp.lt.s32.totalorder %v104, 32
    %v121 = vsel %vm120, 1, 0
    %vm122 = vcmp.eq.s32.totalorder %v121, 1
    %vm123 = vmand %vm116, %vm122
    %vm124 = vmand %vm117, %vm122
    %vm125 = vmand %vm118, %vm122
    %vm126 = vmand %vm119, %vm122
    %v127 = vld [vmem:[%s2] sm:$0xff]
    %v128 = vld [vmem:[%s2 + $0x8] sm:$0xff]
    %v129 = vld [vmem:[%s2 + $0x10] sm:$0xff]
    %v130 = vld [vmem:[%s2 + $0x18] sm:$0xff]
    %v131 = vld [vmem:[%s3] sm:$0x1]
    %132 = vset.pattern.permute.xlu0 0
    %133 = vperm.xlu0 %132, %v127
    %v134 = vpop.permute.xlu0 %133
    %135 = vset.pattern.permute.xlu0 0
    %136 = vperm.xlu0 %135, %v128
    %v137 = vpop.permute.xlu0 %136
    %138 = vset.pattern.permute.xlu0 0
    %139 = vperm.xlu0 %138, %v129
    %v140 = vpop.permute.xlu0 %139
    %141 = vset.pattern.permute.xlu0 0
    %142 = vperm.xlu0 %141, %v130
    %v143 = vpop.permute.xlu0 %142
    %v144 = vperm.slane %v131, 0
    %vm145 = vcmp.eq.s32.totalorder %v134, %v144
    %vm146 = vcmp.eq.s32.totalorder %v137, %v144
    %vm147 = vcmp.eq.s32.totalorder %v140, %v144
    %vm148 = vcmp.eq.s32.totalorder %v143, %v144
    %v149 = vsel %vm123, %v96, 0.0
    %v150 = vsel %vm124, %v98, 0.0
    %v151 = vsel %vm125, %v100, 0.0
    %v152 = vsel %vm126, %v102, 0.0
    %153 = vadd.xlane.f32.xlu0 %v149
    %v154 = vpop.xlane.xlu0 %153
    %155 = vadd.xlane.f32.xlu0 %v150
    %v156 = vpop.xlane.xlu0 %155
    %157 = vadd.xlane.f32.xlu0 %v151
    %v158 = vpop.xlane.xlu0 %157
    %159 = vadd.xlane.f32.xlu0 %v152
    %v160 = vpop.xlane.xlu0 %159
    %v161 = vsel %vm145, %v149, 0.0
    %v162 = vsel %vm146, %v150, 0.0
    %v163 = vsel %vm147, %v151, 0.0
    %v164 = vsel %vm148, %v152, 0.0
    %165 = vadd.xlane.f32.xlu0 %v161
    %v166 = vpop.xlane.xlu0 %165
    %167 = vadd.xlane.f32.xlu0 %v162
    %v168 = vpop.xlane.xlu0 %167
    %169 = vadd.xlane.f32.xlu0 %v163
    %v170 = vpop.xlane.xlu0 %169
    %171 = vadd.xlane.f32.xlu0 %v164
    %v172 = vpop.xlane.xlu0 %171
    %v173 = vld [vmem:[%s4] sm:$0xff]
    %v174 = vld [vmem:[%s4 + $0x8] sm:$0xff]
    %v175 = vld [vmem:[%s4 + $0x10] sm:$0xff]
    %v176 = vld [vmem:[%s4 + $0x18] sm:$0xff]
    %vm177 = vcmp.gt.f32.partialorder %v173, 0.0
    %vm178 = vcmp.gt.f32.partialorder %v174, 0.0
    %vm179 = vcmp.gt.f32.partialorder %v175, 0.0
    %vm180 = vcmp.gt.f32.partialorder %v176, 0.0
    %v181 = vsel %vm177, %v166, %v154
    %v182 = vsel %vm178, %v168, %v156
    %v183 = vsel %vm179, %v170, %v158
    %v184 = vsel %vm180, %v172, %v160
    %v185 = vrcp.pop %v154
    %v186 = vmul.f32 %v154, %v185
    %v187 = vsub.f32 1.0, %v186
    %v188 = vmul.f32 %v185, %v187
    %v189 = vadd.f32 %v185, %v188
    %vm190 = vweird.f32 %v154
    %vm191 = vweird.f32 %v185
    %vm192 = vmor %vm190, %vm191
    %v193 = vsel %vm192, %v185, %v189
    %v194 = vand.u32 2147483647, %v154
    %vm195 = vcmp.eq.f32.partialorder %v194, 8.507059e+37
    %v196 = vand.u32 %v154, 2147483648
    %v197 = vor.u32 1.1754944e-38, %v196
    %v198 = vsel %vm195, %v197, %v193
    %v199 = vmul.f32 %v181, %v198
    %v200 = vrcp.pop %v156
    %v201 = vmul.f32 %v156, %v200
    %v202 = vsub.f32 1.0, %v201
    %v203 = vmul.f32 %v200, %v202
    %v204 = vadd.f32 %v200, %v203
    %vm205 = vweird.f32 %v156
    %vm206 = vweird.f32 %v200
    %vm207 = vmor %vm205, %vm206
    %v208 = vsel %vm207, %v200, %v204
    %v209 = vand.u32 2147483647, %v156
    %vm210 = vcmp.eq.f32.partialorder %v209, 8.507059e+37
    %v211 = vand.u32 %v156, 2147483648
    %v212 = vor.u32 1.1754944e-38, %v211
    %v213 = vsel %vm210, %v212, %v208
    %v214 = vmul.f32 %v182, %v213
    %v215 = vrcp.pop %v158
    %v216 = vmul.f32 %v158, %v215
    %v217 = vsub.f32 1.0, %v216
    %v218 = vmul.f32 %v215, %v217
    %v219 = vadd.f32 %v215, %v218
    %vm220 = vweird.f32 %v158
    %vm221 = vweird.f32 %v215
    %vm222 = vmor %vm220, %vm221
    %v223 = vsel %vm222, %v215, %v219
    %v224 = vand.u32 2147483647, %v158
    %vm225 = vcmp.eq.f32.partialorder %v224, 8.507059e+37
    %v226 = vand.u32 %v158, 2147483648
    %v227 = vor.u32 1.1754944e-38, %v226
    %v228 = vsel %vm225, %v227, %v223
    %v229 = vmul.f32 %v183, %v228
    %v230 = vrcp.pop %v160
    %v231 = vmul.f32 %v160, %v230
    %v232 = vsub.f32 1.0, %v231
    %v233 = vmul.f32 %v230, %v232
    %v234 = vadd.f32 %v230, %v233
    %vm235 = vweird.f32 %v160
    %vm236 = vweird.f32 %v230
    %vm237 = vmor %vm235, %vm236
    %v238 = vsel %vm237, %v230, %v234
    %v239 = vand.u32 2147483647, %v160
    %vm240 = vcmp.eq.f32.partialorder %v239, 8.507059e+37
    %v241 = vand.u32 %v160, 2147483648
    %v242 = vor.u32 1.1754944e-38, %v241
    %v243 = vsel %vm240, %v242, %v238
    %v244 = vmul.f32 %v184, %v243
    %v245 = vlog2.pop %v199
    %v246 = vmul.f32 %v245, 0.6931472
    %v247 = vlog2.pop %v214
    %v248 = vmul.f32 %v247, 0.6931472
    %v249 = vlog2.pop %v229
    %v250 = vmul.f32 %v249, 0.6931472
    %v251 = vlog2.pop %v244
    %v252 = vmul.f32 %v251, 0.6931472
    %v253 = vsel %vm177, %v246, 0.0
    %v254 = vsel %vm178, %v248, 0.0
    %v255 = vsel %vm179, %v250, 0.0
    %v256 = vsel %vm180, %v252, 0.0
    %vm257 = vcmask 7168
    %v258 = vsel %vm257, %v253, 0.0
    %v259 = vsel %vm257, %v254, 0.0
    %v260 = vadd.f32 %v258, %v259
    %v261 = vsel %vm257, %v255, 0.0
    %v262 = vadd.f32 %v260, %v261
    %v263 = vsel %vm257, %v256, 0.0
    %v264 = vadd.f32 %v262, %v263
    %265 = vadd.xlane.f32.xlu0 %v264
    %v266 = vpop.xlane.xlu0 %265
    %v267 = vrot.slane %v266, 4
    %v268 = vadd.f32 %v266, %v267
    %v269 = vrot.slane %v268, 2
    %v270 = vadd.f32 %v268, %v269
    %v271 = vrot.slane %v270, 1
    %v272 = vadd.f32 %v270, %v271
    %s273 = vtos %v272
    %v274 = vsel %vm257, %v173, 0.0
    %v275 = vsel %vm257, %v174, 0.0
    %v276 = vadd.f32 %v274, %v275
    %v277 = vsel %vm257, %v175, 0.0
    %v278 = vadd.f32 %v276, %v277
    %v279 = vsel %vm257, %v176, 0.0
    %v280 = vadd.f32 %v278, %v279
    %281 = vadd.xlane.f32.xlu0 %v280
    %v282 = vpop.xlane.xlu0 %281
    %v283 = vrot.slane %v282, 4
    %v284 = vadd.f32 %v282, %v283
    %v285 = vrot.slane %v284, 2
    %v286 = vadd.f32 %v284, %v285
    %v287 = vrot.slane %v286, 1
    %v288 = vadd.f32 %v286, %v287
    %s289 = vtos %v288
    %vm290 = vcmp.eq.s32.totalorder %v107, 0
    %vm291 = vcmp.eq.s32.totalorder %v107, 1
    %v292 = vstv %s289
    %v293 = vsel %vm291, %v292, 0.0
    %v294 = vstv %s273
    %v295 = vsel %vm290, %v294, %v293
    %296 = vst [vmem:[#allocation5] sm:$0xff] %v295
    // Predicated region
    $region26: #{tpu_custom_call.1} parent=1 // pred_check
      _
    $region27: #{tpu_custom_call.1} parent=1 // pred_check_branch
      %298 = sbr.rel (0) target = $region29
    $region28: #{tpu_custom_call.1} parent=1 // pred_region
      %300 = vsyncadd [#allocation4], 0
      %s302 = sshll.u32 [#allocation5], 4
      %s303 = int_to_ptr.vmem [resolvable:$true] %s302
      %s304 = sshll.u32 %s5, 4
      %s305 = int_to_ptr.hbm [resolvable:$true] %s304
      %307 = dma.vmem_to_hbm [thread:$0]  %s303, 128, %s305, [#allocation4]
    $region29: #{tpu_custom_call.1} parent=1 // pred_fallthru
      _
    // Predicated region
    $region30: #{tpu_custom_call.1} parent=1 // pred_check
      _
    $region31: #{tpu_custom_call.1} parent=1 // pred_check_branch
      %309 = sbr.rel (0) target = $region33
    $region32: #{tpu_custom_call.1} parent=1 // pred_region
      %311 = dma.done [#allocation4], 128
    $region33: #{tpu_custom_call.1} parent=1 // pred_fallthru
      _
    %312 = vsyncpa [#allocation3], 1
    %313 = vsyncpa [#allocation4], 1

</llo_original>
